<compile_context>
chip_gen: v7x
topology: tpu7x:2x2x1
jax: 0.10.0
libtpu: 0.0.40
codegen_flags: <defaults>
</compile_context>

<pallas_src>
import functools

import jax
import jax.numpy as jnp
from jax.experimental import pallas as pl
from jax.experimental.pallas import tpu as pltpu


def _make_dense_kernel(x_ref, w_ref, out_ref, pad_ref, patch_ref, *, H, W):
    # x_ref    : (1, C, H*W)         f32  one batch element, spatial flattened on lanes
    # w_ref    : (G, 9*C)            f32  im2col weights, row = (ky*3+kx)*C + c
    # out_ref  : (1, C+G, H*W)       f32  rows [0:C] = x, rows [C:] = relu(conv)
    # pad_ref  : (C, H*W + 2*(W+1))  f32  zero-halo scratch (flattened SAME padding)
    # patch_ref: (9*C, H*W)          f32  im2col patch matrix scratch
    _, C, HW = x_ref.shape
    G = w_ref.shape[0]
    P = W + 1  # halo width on each side of the flattened axis (max |dy*W + dx|)

    x = x_ref[0]  # (C, HW) f32 -- also the exact passthrough copy

    # Zero-fill the halo scratch and place x in the middle: pad[:, P + i] = x[:, i].
    pad_ref[...] = jnp.zeros(pad_ref.shape, pad_ref.dtype)
    pad_ref[:, P:P + HW] = x

    # Column index of every flattened spatial position. Row-overflow taps either
    # land in the zero halo or are caught by the column mask, so only column
    # (left/right edge) masks are needed.
    col = jax.lax.broadcasted_iota(jnp.int32, (C, HW), 1) % W

    # Build the (9*C, HW) im2col patch matrix: tap (ky, kx) is a static window of
    # the halo scratch (a lane shift by dy*W + dx), masked at the image's
    # left/right edges.
    for ky in range(3):
        for kx in range(3):
            dy, dx = ky - 1, kx - 1
            start = P + dy * W + dx
            tap = pad_ref[:, start:start + HW]          # (C, HW)
            if dx < 0:
                tap = jnp.where(col >= -dx, tap, 0.0)
            elif dx > 0:
                tap = jnp.where(col < W - dx, tap, 0.0)
            t = ky * 3 + kx
            patch_ref[t * C:(t + 1) * C, :] = tap

    # Single MXU matmul, K = 9*C: bf16 operands, f32 accumulation.
    acc = jnp.dot(w_ref[...].astype(jnp.bfloat16),
                  patch_ref[...].astype(jnp.bfloat16),
                  preferred_element_type=jnp.float32)   # (G, HW) f32

    # "Concat" = two lane-dense sublane-range stores (no vreg shuffles).
    out_ref[0, 0:C, :] = x
    out_ref[0, C:C + G, :] = jnp.maximum(acc, 0.0).astype(out_ref.dtype)


def make_dense_forward(x_nchw, weight_oikk):
    """x_nchw: (N, C, H, W) float32; weight_oikk: (G, C, 3, 3) float32 (PyTorch layout)."""
    N, C, H, W = x_nchw.shape
    G = weight_oikk.shape[0]
    HW = H * W

    # Free reshape only (collapse of contiguous trailing dims) -- no transpose,
    # no jnp.pad HBM round trip.
    x_flat = x_nchw.reshape(N, C, HW)
    # (G, C, 3, 3) -> (G, 3, 3, C) -> (G, 9*C); tiny weight, reshaped once.
    w_im2col = jnp.transpose(weight_oikk, (0, 2, 3, 1)).reshape(G, 9 * C)

    out_flat = pl.pallas_call(
        functools.partial(_make_dense_kernel, H=H, W=W),
        out_shape=jax.ShapeDtypeStruct((N, C + G, HW), x_nchw.dtype),
        grid=(N,),
        in_specs=[
            pl.BlockSpec((1, C, HW), lambda n: (n, 0, 0)),
            pl.BlockSpec((G, 9 * C), lambda n: (0, 0)),
        ],
        out_specs=pl.BlockSpec((1, C + G, HW), lambda n: (n, 0, 0)),
        scratch_shapes=[
            pltpu.VMEM((C, HW + 2 * (W + 1)), jnp.float32),  # zero-halo input
            pltpu.VMEM((9 * C, HW), jnp.float32),            # im2col patches
        ],
        compiler_params=pltpu.CompilerParams(
            dimension_semantics=("parallel",)),
    )(x_flat, w_im2col)

    # TODO(synk): for large MSBDN resolutions, add an H-row-tile grid axis (with
    # a row halo) so the per-step footprint stays within v7x's 64 MiB VMEM and
    # both TensorCores get work when N == 1; unnecessary at these small shapes.
    return out_flat.reshape(N, C + G, H, W)


def _reference(x_nchw, weight_oikk):
    conv = jax.lax.conv_general_dilated(
        x_nchw, weight_oikk, window_strides=(1, 1), padding="SAME",
        dimension_numbers=("NCHW", "OIHW", "NCHW"))
    return jnp.concatenate([x_nchw, jax.nn.relu(conv)], axis=1)


if __name__ == "__main__":
    # small shapes consistent with the module: batch=2, nChannels=4, growthRate=8, spatial=16
    N, C, G, H, W = 2, 4, 8, 16, 16
    key = jax.random.PRNGKey(0)
    kx, kw = jax.random.split(key)
    x = jax.random.normal(kx, (N, C, H, W), dtype=jnp.float32)
    # deterministic kaiming-ish init for the conv weight (G, C, 3, 3), bias=False
    weight = jax.random.normal(kw, (G, C, 3, 3), dtype=jnp.float32) * (2.0 / (C * 9)) ** 0.5

    out = make_dense_forward(x, weight)
    out = jax.block_until_ready(out)
    assert out.shape == (N, C + G, H, W)

    ref = _reference(x, weight)
    # Passthrough channels are copied exactly; conv channels use bf16 MXU
    # operands with f32 accumulation, so compare with a relaxed tolerance.
    assert jnp.array_equal(out[:, :C], x), "passthrough channels differ"
    assert jnp.allclose(out[:, C:], ref[:, C:], atol=5e-2, rtol=5e-2), \
        "conv mismatch vs reference"
    print("KERNEL_OK")
</pallas_src>

<mosaic_0001>
module attributes {stable_mosaic.version = 11 : i64} {
  func.func @_make_dense_kernel(%arg0: i32, %arg1: memref<1x4x256xf32, #tpu.memory_space<vmem>>, %arg2: memref<8x36xf32, #tpu.memory_space<vmem>>, %arg3: memref<1x12x256xf32, #tpu.memory_space<vmem>>, %arg4: memref<4x290xf32, #tpu.memory_space<vmem>>, %arg5: memref<36x256xf32, #tpu.memory_space<vmem>>) attributes {dimension_semantics = [#tpu.dimension_semantics<parallel>], iteration_bounds = array<i64: 2>, scalar_prefetch = 0 : i64, scratch_operands = 2 : i64, tpu.core_type = #tpu.core_type<tc>, window_params = [{transform_indices = @transform_0, window_bounds = array<i64: 1, 4, 256>}, {pipeline_mode = #tpu.pipeline_mode<synchronous>, transform_indices = @transform_1, window_bounds = array<i64: 8, 36>}, {transform_indices = @transform_2, window_bounds = array<i64: 1, 12, 256>}]} {
    %c0 = arith.constant 0 : index
    %c0_0 = arith.constant 0 : index
    %c0_1 = arith.constant 0 : index
    %0 = vector.load %arg1[%c0, %c0_0, %c0_1] : memref<1x4x256xf32, #tpu.memory_space<vmem>>, vector<1x4x256xf32>
    %1 = vector.shape_cast %0 : vector<1x4x256xf32> to vector<4x256xf32>
    %cst = arith.constant 0.000000e+00 : f32
    %2 = vector.broadcast %cst : f32 to vector<4x290xf32>
    %c0_2 = arith.constant 0 : index
    %c0_3 = arith.constant 0 : index
    %3 = vector.load %arg4[%c0_2, %c0_3] : memref<4x290xf32, #tpu.memory_space<vmem>>, vector<4x290xf32>
    tpu.vector_store %arg4[%c0_2, %c0_3], %2 {strides = array<i32>} : memref<4x290xf32, #tpu.memory_space<vmem>>, vector<4x290xf32>,
    %c0_4 = arith.constant 0 : index
    %c17 = arith.constant 17 : index
    %4 = vector.load %arg4[%c0_4, %c17] : memref<4x290xf32, #tpu.memory_space<vmem>>, vector<4x256xf32>
    tpu.vector_store %arg4[%c0_4, %c17], %1 {strides = array<i32>} : memref<4x290xf32, #tpu.memory_space<vmem>>, vector<4x256xf32>,
    %5 = tpu.iota {dimensions = array<i32: 1>} : vector<4x256xi32>
    %c16_i32 = arith.constant 16 : i32
    %c0_i32 = arith.constant 0 : i32
    %6 = arith.cmpi eq, %c16_i32, %c0_i32 : i32
    %c1_i32 = arith.constant 1 : i32
    %7 = arith.select %6, %c1_i32, %c16_i32 : i32
    %8 = vector.broadcast %7 : i32 to vector<4x256xi32>
    %9 = arith.remsi %5, %8 : vector<4x256xi32>
    %c0_i32_5 = arith.constant 0 : i32
    %10 = vector.broadcast %c0_i32_5 : i32 to vector<4x256xi32>
    %11 = arith.cmpi ne, %9, %10 : vector<4x256xi32>
    %c0_i32_6 = arith.constant 0 : i32
    %12 = vector.broadcast %c0_i32_6 : i32 to vector<4x256xi32>
    %13 = arith.cmpi slt, %9, %12 : vector<4x256xi32>
    %c0_i32_7 = arith.constant 0 : i32
    %14 = arith.cmpi slt, %7, %c0_i32_7 : i32
    %15 = vector.broadcast %14 : i1 to vector<4x256xi1>
    %16 = vector.broadcast %15 : vector<4x256xi1> to vector<4x256xi1>
    %17 = arith.xori %13, %16 : vector<4x256xi1>
    %18 = arith.andi %17, %11 : vector<4x256xi1>
    %19 = vector.broadcast %7 : i32 to vector<4x256xi32>
    %20 = arith.addi %9, %19 : vector<4x256xi32>
    %21 = arith.select %18, %20, %9 : vector<4x256xi1>, vector<4x256xi32>
    %c0_8 = arith.constant 0 : index
    %c0_9 = arith.constant 0 : index
    %22 = vector.load %arg4[%c0_8, %c0_9] : memref<4x290xf32, #tpu.memory_space<vmem>>, vector<4x256xf32>
    %c1_i32_10 = arith.constant 1 : i32
    %23 = vector.broadcast %c1_i32_10 : i32 to vector<4x256xi32>
    %24 = arith.cmpi sge, %21, %23 : vector<4x256xi32>
    %cst_11 = arith.constant 0.000000e+00 : f32
    %25 = vector.broadcast %cst_11 : f32 to vector<4x256xf32>
    %26 = arith.select %24, %22, %25 : vector<4x256xi1>, vector<4x256xf32>
    %c0_12 = arith.constant 0 : index
    %c0_13 = arith.constant 0 : index
    %27 = vector.load %arg5[%c0_12, %c0_13] : memref<36x256xf32, #tpu.memory_space<vmem>>, vector<4x256xf32>
    tpu.vector_store %arg5[%c0_12, %c0_13], %26 {strides = array<i32>} : memref<36x256xf32, #tpu.memory_space<vmem>>, vector<4x256xf32>,
    %c0_14 = arith.constant 0 : index
    %c1 = arith.constant 1 : index
    %28 = vector.load %arg4[%c0_14, %c1] : memref<4x290xf32, #tpu.memory_space<vmem>>, vector<4x256xf32>
    %c4 = arith.constant 4 : index
    %c0_15 = arith.constant 0 : index
    %29 = vector.load %arg5[%c4, %c0_15] : memref<36x256xf32, #tpu.memory_space<vmem>>, vector<4x256xf32>
    tpu.vector_store %arg5[%c4, %c0_15], %28 {strides = array<i32>} : memref<36x256xf32, #tpu.memory_space<vmem>>, vector<4x256xf32>,
    %c0_16 = arith.constant 0 : index
    %c2 = arith.constant 2 : index
    %30 = vector.load %arg4[%c0_16, %c2] : memref<4x290xf32, #tpu.memory_space<vmem>>, vector<4x256xf32>
    %c15_i32 = arith.constant 15 : i32
    %31 = vector.broadcast %c15_i32 : i32 to vector<4x256xi32>
    %32 = arith.cmpi slt, %21, %31 : vector<4x256xi32>
    %cst_17 = arith.constant 0.000000e+00 : f32
    %33 = vector.broadcast %cst_17 : f32 to vector<4x256xf32>
    %34 = arith.select %32, %30, %33 : vector<4x256xi1>, vector<4x256xf32>
    %c8 = arith.constant 8 : index
    %c0_18 = arith.constant 0 : index
    %35 = vector.load %arg5[%c8, %c0_18] : memref<36x256xf32, #tpu.memory_space<vmem>>, vector<4x256xf32>
    tpu.vector_store %arg5[%c8, %c0_18], %34 {strides = array<i32>} : memref<36x256xf32, #tpu.memory_space<vmem>>, vector<4x256xf32>,
    %c0_19 = arith.constant 0 : index
    %c16 = arith.constant 16 : index
    %36 = vector.load %arg4[%c0_19, %c16] : memref<4x290xf32, #tpu.memory_space<vmem>>, vector<4x256xf32>
    %c1_i32_20 = arith.constant 1 : i32
    %37 = vector.broadcast %c1_i32_20 : i32 to vector<4x256xi32>
    %38 = arith.cmpi sge, %21, %37 : vector<4x256xi32>
    %cst_21 = arith.constant 0.000000e+00 : f32
    %39 = vector.broadcast %cst_21 : f32 to vector<4x256xf32>
    %40 = arith.select %38, %36, %39 : vector<4x256xi1>, vector<4x256xf32>
    %c12 = arith.constant 12 : index
    %c0_22 = arith.constant 0 : index
    %41 = vector.load %arg5[%c12, %c0_22] : memref<36x256xf32, #tpu.memory_space<vmem>>, vector<4x256xf32>
    tpu.vector_store %arg5[%c12, %c0_22], %40 {strides = array<i32>} : memref<36x256xf32, #tpu.memory_space<vmem>>, vector<4x256xf32>,
    %c0_23 = arith.constant 0 : index
    %c17_24 = arith.constant 17 : index
    %42 = vector.load %arg4[%c0_23, %c17_24] : memref<4x290xf32, #tpu.memory_space<vmem>>, vector<4x256xf32>
    %c16_25 = arith.constant 16 : index
    %c0_26 = arith.constant 0 : index
    %43 = vector.load %arg5[%c16_25, %c0_26] : memref<36x256xf32, #tpu.memory_space<vmem>>, vector<4x256xf32>
    tpu.vector_store %arg5[%c16_25, %c0_26], %42 {strides = array<i32>} : memref<36x256xf32, #tpu.memory_space<vmem>>, vector<4x256xf32>,
    %c0_27 = arith.constant 0 : index
    %c18 = arith.constant 18 : index
    %44 = vector.load %arg4[%c0_27, %c18] : memref<4x290xf32, #tpu.memory_space<vmem>>, vector<4x256xf32>
    %c15_i32_28 = arith.constant 15 : i32
    %45 = vector.broadcast %c15_i32_28 : i32 to vector<4x256xi32>
    %46 = arith.cmpi slt, %21, %45 : vector<4x256xi32>
    %cst_29 = arith.constant 0.000000e+00 : f32
    %47 = vector.broadcast %cst_29 : f32 to vector<4x256xf32>
    %48 = arith.select %46, %44, %47 : vector<4x256xi1>, vector<4x256xf32>
    %c20 = arith.constant 20 : index
    %c0_30 = arith.constant 0 : index
    %49 = vector.load %arg5[%c20, %c0_30] : memref<36x256xf32, #tpu.memory_space<vmem>>, vector<4x256xf32>
    tpu.vector_store %arg5[%c20, %c0_30], %48 {strides = array<i32>} : memref<36x256xf32, #tpu.memory_space<vmem>>, vector<4x256xf32>,
    %c0_31 = arith.constant 0 : index
    %c32 = arith.constant 32 : index
    %50 = vector.load %arg4[%c0_31, %c32] : memref<4x290xf32, #tpu.memory_space<vmem>>, vector<4x256xf32>
    %c1_i32_32 = arith.constant 1 : i32
    %51 = vector.broadcast %c1_i32_32 : i32 to vector<4x256xi32>
    %52 = arith.cmpi sge, %21, %51 : vector<4x256xi32>
    %cst_33 = arith.constant 0.000000e+00 : f32
    %53 = vector.broadcast %cst_33 : f32 to vector<4x256xf32>
    %54 = arith.select %52, %50, %53 : vector<4x256xi1>, vector<4x256xf32>
    %c24 = arith.constant 24 : index
    %c0_34 = arith.constant 0 : index
    %55 = vector.load %arg5[%c24, %c0_34] : memref<36x256xf32, #tpu.memory_space<vmem>>, vector<4x256xf32>
    tpu.vector_store %arg5[%c24, %c0_34], %54 {strides = array<i32>} : memref<36x256xf32, #tpu.memory_space<vmem>>, vector<4x256xf32>,
    %c0_35 = arith.constant 0 : index
    %c33 = arith.constant 33 : index
    %56 = vector.load %arg4[%c0_35, %c33] : memref<4x290xf32, #tpu.memory_space<vmem>>, vector<4x256xf32>
    %c28 = arith.constant 28 : index
    %c0_36 = arith.constant 0 : index
    %57 = vector.load %arg5[%c28, %c0_36] : memref<36x256xf32, #tpu.memory_space<vmem>>, vector<4x256xf32>
    tpu.vector_store %arg5[%c28, %c0_36], %56 {strides = array<i32>} : memref<36x256xf32, #tpu.memory_space<vmem>>, vector<4x256xf32>,
    %c0_37 = arith.constant 0 : index
    %c34 = arith.constant 34 : index
    %58 = vector.load %arg4[%c0_37, %c34] : memref<4x290xf32, #tpu.memory_space<vmem>>, vector<4x256xf32>
    %c15_i32_38 = arith.constant 15 : i32
    %59 = vector.broadcast %c15_i32_38 : i32 to vector<4x256xi32>
    %60 = arith.cmpi slt, %21, %59 : vector<4x256xi32>
    %cst_39 = arith.constant 0.000000e+00 : f32
    %61 = vector.broadcast %cst_39 : f32 to vector<4x256xf32>
    %62 = arith.select %60, %58, %61 : vector<4x256xi1>, vector<4x256xf32>
    %c32_40 = arith.constant 32 : index
    %c0_41 = arith.constant 0 : index
    %63 = vector.load %arg5[%c32_40, %c0_41] : memref<36x256xf32, #tpu.memory_space<vmem>>, vector<4x256xf32>
    tpu.vector_store %arg5[%c32_40, %c0_41], %62 {strides = array<i32>} : memref<36x256xf32, #tpu.memory_space<vmem>>, vector<4x256xf32>,
    %c0_42 = arith.constant 0 : index
    %c0_43 = arith.constant 0 : index
    %64 = vector.load %arg2[%c0_42, %c0_43] : memref<8x36xf32, #tpu.memory_space<vmem>>, vector<8x36xf32>
    %65 = arith.truncf %64 : vector<8x36xf32> to vector<8x36xbf16>
    %c0_44 = arith.constant 0 : index
    %c0_45 = arith.constant 0 : index
    %66 = vector.load %arg5[%c0_44, %c0_45] : memref<36x256xf32, #tpu.memory_space<vmem>>, vector<36x256xf32>
    %67 = arith.truncf %66 : vector<36x256xf32> to vector<36x256xbf16>
    %cst_46 = arith.constant dense<0.000000e+00> : vector<8x256xf32>
    %68 = tpu.matmul %65, %67, %cst_46 {dimension_numbers = #tpu.dot_dimension_numbers<[1], [0], [0], [1], [0, 0, 1, 1], [], []>} : vector<8x36xbf16>, vector<36x256xbf16>, vector<8x256xf32> -> vector<8x256xf32>
    %c0_47 = arith.constant 0 : index
    %c0_48 = arith.constant 0 : index
    %c0_49 = arith.constant 0 : index
    %69 = vector.load %arg3[%c0_47, %c0_48, %c0_49] : memref<1x12x256xf32, #tpu.memory_space<vmem>>, vector<1x4x256xf32>
    %70 = vector.shape_cast %69 : vector<1x4x256xf32> to vector<4x256xf32>
    %71 = vector.shape_cast %1 : vector<4x256xf32> to vector<1x4x256xf32>
    tpu.vector_store %arg3[%c0_47, %c0_48, %c0_49], %71 {strides = array<i32>} : memref<1x12x256xf32, #tpu.memory_space<vmem>>, vector<1x4x256xf32>,
    %cst_50 = arith.constant 0.000000e+00 : f32
    %72 = vector.broadcast %cst_50 : f32 to vector<8x256xf32>
    %73 = arith.maximumf %68, %72 : vector<8x256xf32>
    %c0_51 = arith.constant 0 : index
    %c4_52 = arith.constant 4 : index
    %c0_53 = arith.constant 0 : index
    %74 = vector.load %arg3[%c0_51, %c4_52, %c0_53] : memref<1x12x256xf32, #tpu.memory_space<vmem>>, vector<1x8x256xf32>
    %75 = vector.shape_cast %74 : vector<1x8x256xf32> to vector<8x256xf32>
    %76 = vector.shape_cast %73 : vector<8x256xf32> to vector<1x8x256xf32>
    tpu.vector_store %arg3[%c0_51, %c4_52, %c0_53], %76 {strides = array<i32>} : memref<1x12x256xf32, #tpu.memory_space<vmem>>, vector<1x8x256xf32>,
    return
  }
  func.func @transform_0(%arg0: i32) -> (i32, i32, i32) {
    %c0_i32 = arith.constant 0 : i32
    %c0_i32_0 = arith.constant 0 : i32
    %c0_i32_1 = arith.constant 0 : i32
    return %arg0, %c0_i32, %c0_i32_0 : i32, i32, i32
  }
  func.func @transform_1(%arg0: i32) -> (i32, i32) {
    %c0_i32 = arith.constant 0 : i32
    %c0_i32_0 = arith.constant 0 : i32
    %c0_i32_1 = arith.constant 0 : i32
    return %c0_i32, %c0_i32_0 : i32, i32
  }
  func.func @transform_2(%arg0: i32) -> (i32, i32, i32) {
    %c0_i32 = arith.constant 0 : i32
    %c0_i32_0 = arith.constant 0 : i32
    %c0_i32_1 = arith.constant 0 : i32
    return %arg0, %c0_i32, %c0_i32_0 : i32, i32, i32
  }
}

</mosaic_0001>

<llo_original>
// kernel: tpu_custom_call.1
$region0: #{tpu_custom_call.1}
  #allocation0 [shape = 'u32[]', space=smem, size = 0x4, offset = 0x4, fixed_abs, tag = 'smem constant byte address 0x4 - core index']
  #allocation1 [shape = 'u32[144,128]{1,0:T(1,128)}', space=vmem, size = 0x12000, scoped, tag = 'internal scratch']
  #allocation2 [shape = 'f32[4,290]{1,0:T(4,128)}', space=vmem, size = 0x1800, scoped, tag = 'scratch operand']
  #allocation3 [shape = 'f32[36,256]{1,0:T(8,128)}', space=vmem, size = 0xa000, scoped, tag = 'scratch operand']
  %s0 = inlined_call_operand.hbm [shape: f32[2,4,256], index: 0, kind: input, shape index: {}]
  %s1 = inlined_call_operand.hbm [shape: f32[8,36], index: 1, kind: input, shape index: {}]
  %s2 = inlined_call_operand.vmem [shape: f32[2,12,256], index: 2, kind: output, shape index: {}]
  %s3 = sld [smem:[#allocation0]]
  $region49: #{tpu_custom_call.1} parent=0
    _
  %s5 = ssub.s32 1, %s3
  %s6 = scalar_select 0, %s5, %s3
  $region1: #{tpu_custom_call.1} parent=0
    #allocation4 [shape = 'u8[8192]{0}', space=vmem, size = 0x2000, scoped, tag = 'input window, operand 0']
    #allocation5 [shape = 's32[2]{0}', space=sflag, size = 0x8, scoped, tag = 'scoped memory for tpu_custom_call.1']
    #allocation6 [shape = 'u8[4096]{0}', space=vmem, size = 0x1000, scoped, tag = 'input window, operand 1, single buffered']
    #allocation7 [shape = 's32[1]{0}', space=sflag, size = 0x4, scoped, tag = 'scoped memory for tpu_custom_call.1']
    %7 = vsyncpa [#allocation5], 0
    %s8 = scalar_lea.sflag [#allocation5], 1
    %9 = vsyncpa %s8, 0
    %10 = vsyncpa [#allocation7], 0
    loop: start=0, step=1, limit=4
    $region2: #{tpu_custom_call.1} parent=1 // loop_pre_header
      _
    $region3: #{tpu_custom_call.1} parent=1 // loop_header
      %s12 = sphi 0, %s16
      %p13 = scmp.ge.s32.totalorder %s12, 4
      %s22 = sphi 0, %s24
      %s25 = sphi 0, %s22
      %s26 = sphi 0, %s25
      %s42 = sphi 0, %s26
      %s46 = sphi 0, %s46
      %s48 = sphi 0, %s46
      %s49 = sphi 0, %s48
      %s63 = sphi 0, %s49
      %s69 = sphi 0, %s71
      %s72 = sphi 0, %s69
      %s73 = sphi 0, %s72
      %s89 = sphi 0, %s73
    $region4: #{tpu_custom_call.1} parent=1 // loop_header_branch
      %15 = sbr.rel (%p13) target = $region8
    $region5: #{tpu_custom_call.1} parent=1 // loop_body
      %s17 = ssub.s32 %s12, 1
      %s18 = ssub.s32 %s12, 2
      %s19 = sadd.s32 %s12, 1
      %s20 = ssub.s32 %s12, %s19
      %p21 = scmp.eq.s32.totalorder %s20, 0
      %s23 = sadd.s32 %s22, 1
      %s24 = scalar_select %p21, %s22, %s23
      %p27 = pneg %p21
      %p28 = scmp.eq.s32.totalorder %s12, 1
      %p29 = por %p27, %p28
      %p30 = scmp.ne.s32.totalorder %s22, %s25
      %p31 = scmp.eq.s32.totalorder %s12, 0
      %p32 = por %p30, %p31
      %p33 = scmp.ne.s32.totalorder %s22, %s25
      %p34 = scmp.eq.s32.totalorder %s17, 1
      %p35 = por %p33, %p34
      %p36 = scmp.ne.s32.totalorder %s25, %s26
      %p37 = scmp.eq.s32.totalorder %s17, 0
      %p38 = por %p36, %p37
      %p39 = scmp.ne.s32.totalorder %s25, %s26
      %p40 = scmp.eq.s32.totalorder %s18, 1
      %p41 = por %p39, %p40
      %p43 = scmp.ne.s32.totalorder %s26, %s42
      %p44 = scmp.eq.s32.totalorder %s18, 0
      %p45 = por %p43, %p44
      %s47 = sadd.s32 %s46, 1
      %p50 = scmp.eq.s32.totalorder %s12, 1
      %p51 = scmp.ne.s32.totalorder %s46, %s48
      %p52 = scmp.eq.s32.totalorder %s12, 0
      %p53 = por %p51, %p52
      %p54 = scmp.ne.s32.totalorder %s46, %s48
      %p55 = scmp.eq.s32.totalorder %s17, 1
      %p56 = por %p54, %p55
      %p57 = scmp.ne.s32.totalorder %s48, %s49
      %p58 = scmp.eq.s32.totalorder %s17, 0
      %p59 = por %p57, %p58
      %p60 = scmp.ne.s32.totalorder %s48, %s49
      %p61 = scmp.eq.s32.totalorder %s18, 1
      %p62 = por %p60, %p61
      %p64 = scmp.ne.s32.totalorder %s49, %s63
      %p65 = scmp.eq.s32.totalorder %s18, 0
      %p66 = por %p64, %p65
      %s67 = ssub.s32 %s12, %s19
      %p68 = scmp.eq.s32.totalorder %s67, 0
      %s70 = sadd.s32 %s69, 1
      %s71 = scalar_select %p68, %s69, %s70
      %p74 = pneg %p68
      %p75 = scmp.eq.s32.totalorder %s12, 1
      %p76 = por %p74, %p75
      %p77 = scmp.ne.s32.totalorder %s69, %s72
      %p78 = scmp.eq.s32.totalorder %s12, 0
      %p79 = por %p77, %p78
      %p80 = scmp.ne.s32.totalorder %s69, %s72
      %p81 = scmp.eq.s32.totalorder %s17, 1
      %p82 = por %p80, %p81
      %p83 = scmp.ne.s32.totalorder %s72, %s73
      %p84 = scmp.eq.s32.totalorder %s17, 0
      %p85 = por %p83, %p84
      %p86 = scmp.ne.s32.totalorder %s72, %s73
      %p87 = scmp.eq.s32.totalorder %s18, 1
      %p88 = por %p86, %p87
      %p90 = scmp.ne.s32.totalorder %s73, %s89
      %p91 = scmp.eq.s32.totalorder %s18, 0
      %p92 = por %p90, %p91
      %p93 = scmp.le.s32.totalorder 1, %s12
      %p94 = scmp.lt.s32.totalorder %s12, 3
      %p95 = pnand %p93, %p94
      %p96 = pneg %p95
      // Predicated region
      $region9: #{tpu_custom_call.1} parent=5 // pred_check
        _
      $region10: #{tpu_custom_call.1} parent=5 // pred_check_branch
        %98 = sbr.rel (%p95) target = $region12
      $region11: #{tpu_custom_call.1} parent=5 // pred_region
        %s99 = ssub.s32 %s12, 1
        // Predicated region
        $region13: #{tpu_custom_call.1} parent=11 // pred_check
          %p100 = pneg %p59
        $region14: #{tpu_custom_call.1} parent=11 // pred_check_branch
          %102 = sbr.rel (%p100) target = $region16
        $region15: #{tpu_custom_call.1} parent=11 // pred_region
          %s104 = ssub.s32 128, 128
          %105 = vsyncadd [#allocation7], %s104
          %s107 = sshll.u32 [#allocation6], 4
          %s108 = int_to_ptr.vmem [resolvable:$true] %s107
          %110 = dma.hbm_to_vmem [thread:$0]  %s1, 128, %s108, [#allocation7]
        $region16: #{tpu_custom_call.1} parent=11 // pred_fallthru
          _
      $region12: #{tpu_custom_call.1} parent=5 // pred_fallthru
        _
      %p111 = scmp.lt.s32.totalorder %s12, 2
      // Predicated region
      $region17: #{tpu_custom_call.1} parent=5 // pred_check
        %p112 = pneg %p111
      $region18: #{tpu_custom_call.1} parent=5 // pred_check_branch
        %114 = sbr.rel (%p112) target = $region20
      $region19: #{tpu_custom_call.1} parent=5 // pred_region
        // Predicated region
        $region21: #{tpu_custom_call.1} parent=19 // pred_check
          %p115 = pneg %p32
        $region22: #{tpu_custom_call.1} parent=19 // pred_check_branch
          %117 = sbr.rel (%p115) target = $region24
        $region23: #{tpu_custom_call.1} parent=19 // pred_region
          %s118 = sand.u32 %s22, 1
          %s119 = scalar_lea.sflag [#allocation5], %s118
          %s120 = sand.u32 %s22, 1
          %s121 = smul.addr %s120, 8
          %s122 = scalar_lea.vmem [#allocation4], %s121
          %s124 = ssub.s32 128, 128
          %125 = vsyncadd %s119, %s124
          %s126 = smul.addr %s12, 2
          %s127 = smul.addr %s126, 64
          %s128 = scalar_lea.hbm %s0, %s127
          %s130 = sshll.u32 %s122, 4
          %s131 = int_to_ptr.vmem [resolvable:$true] %s130
          %133 = dma.hbm_to_vmem [thread:$0]  %s128, 128, %s131, %s119
        $region24: #{tpu_custom_call.1} parent=19 // pred_fallthru
          _
      $region20: #{tpu_custom_call.1} parent=5 // pred_fallthru
        _
      %p134 = scmp.le.s32.totalorder 1, %s12
      %p135 = scmp.lt.s32.totalorder %s12, 3
      %p136 = pnand %p134, %p135
      %p137 = pneg %p136
      // Predicated region
      $region25: #{tpu_custom_call.1} parent=5 // pred_check
        _
      $region26: #{tpu_custom_call.1} parent=5 // pred_check_branch
        %139 = sbr.rel (%p136) target = $region28
      $region27: #{tpu_custom_call.1} parent=5 // pred_region
        %s140 = ssub.s32 %s12, 1
        %s141 = sand.u32 %s25, 1
        %s142 = scalar_lea.sflag [#allocation5], %s141
        %s143 = sand.u32 %s25, 1
        %s144 = smul.addr %s143, 8
        %s145 = scalar_lea.vmem [#allocation4], %s144
        // Predicated region
        $region29: #{tpu_custom_call.1} parent=27 // pred_check
          %p146 = pneg %p38
        $region30: #{tpu_custom_call.1} parent=27 // pred_check_branch
          %148 = sbr.rel (%p146) target = $region32
        $region31: #{tpu_custom_call.1} parent=27 // pred_region
          %149 = dma.done %s142, 128
        $region32: #{tpu_custom_call.1} parent=27 // pred_fallthru
          _
        // Predicated region
        $region33: #{tpu_custom_call.1} parent=27 // pred_check
          %p150 = pneg %p59
        $region34: #{tpu_custom_call.1} parent=27 // pred_check_branch
          %152 = sbr.rel (%p150) target = $region36
        $region35: #{tpu_custom_call.1} parent=27 // pred_region
          %153 = dma.done [#allocation7], 128
        $region36: #{tpu_custom_call.1} parent=27 // pred_fallthru
          _
        %s154 = sand.u32 %s25, 1
        %s155 = scalar_lea.sflag [#allocation5], %s154
        %s156 = sand.u32 %s25, 1
        %s157 = smul.addr %s156, 8
        %s158 = scalar_lea.vmem [#allocation4], %s157
        %p159 = pneg %p38
        %p160 = pneg %p35
        %p161 = pneg %p59
        %p162 = pneg %p56
        %p163 = pneg %p85
        %p164 = pneg %p82
        %p165 = scmp.lt.s32.totalorder %s17, 1
        %s166 = scalar_select %p165, %s17, 1
        %s167 = smul.addr %s166, 4
        %s168 = smul.addr %s167, 8
        %s169 = scalar_lea.vmem %s2, %s168
        %p170 = scmp.lt.s32.totalorder %s17, 1
        %s171 = scalar_select %p170, %s17, 1
        %s172 = smul.addr %s171, 4
        %s173 = smul.addr %s172, 8
        %s174 = scalar_lea.vmem %s2, %s173
        %v176 = vld [vmem:[%s145] sm:$0xff]
        %177 = vst [vmem:[#allocation2] sm:$0xff] 0.0
        %vm178 = vcmask 273408
        %179 = vst.msk [vmem:[#allocation2 + $0x8] sm:$0xf] %vm178, 0.0
        %181 = vrot.lane.b32.xlu0 %v176, 17
        %v182 = vpop.permute.xlu0 %181
        %v183 = vrot.slane %v182, 4
        %vm184 = vcmask 138240
        %v185 = vsel %vm184, %v183, %v182
        %vm188 = vcmask 1043592
        %vm189 = vcmask 1047556
        %vm190 = vmor %vm189, %vm188
        %191 = vst.msk [vmem:[#allocation2] sm:$0xff] %vm190, %v185
        %vm192 = vcmask 134144
        %193 = vst.msk [vmem:[#allocation2 + $0x8] sm:$0xf] %vm192, %v183
        %v194 = vlaneseq
        %v195 = vand.u32 %v194, 127
        %v196 = vadd.s32 %v195, 128
        %vm197 = vcmp.lt.s32.totalorder %v195, 0
        %v198 = vsub.s32 0, %v195
        %v199 = vsel %vm197, %v198, %v195
        %v200 = vshrl.u32 %v199, 4
        %v201 = vand.u32 %v199, 15
        %v202 = vsub.s32 0, %v201
        %v203 = vsel %vm197, %v202, %v201
        %vm204 = vcmp.lt.s32.totalorder %v196, 0
        %v205 = vsub.s32 0, %v196
        %v206 = vsel %vm204, %v205, %v196
        %v207 = vshrl.u32 %v206, 4
        %v208 = vand.u32 %v206, 15
        %v209 = vsub.s32 0, %v208
        %v210 = vsel %vm204, %v209, %v208
        %vm211 = vcmp.ne.s32.totalorder %v203, 0
        %vm212 = vcmp.ne.s32.totalorder %v210, 0
        %vm213 = vcmp.lt.s32.totalorder %v203, 0
        %vm214 = vcmp.lt.s32.totalorder %v210, 0
        %vm215 = vmand %vm213, %vm211
        %vm216 = vmand %vm214, %vm212
        %v217 = vadd.s32 %v203, 16
        %v218 = vadd.s32 %v210, 16
        %v219 = vsel %vm215, %v217, %v203
        %v220 = vsel %vm216, %v218, %v210
        %v221 = vld [vmem:[#allocation2] sm:$0xff]
        %vm222 = vcmp.ge.s32.totalorder %v219, 1
        %vm223 = vcmp.ge.s32.totalorder %v220, 1
        %v225 = vcombine.high %v221, %v221
        %v227 = vsel %vm222, %v221, 0.0
        %v228 = vsel %vm223, %v225, 0.0
        %229 = vst [vmem:[#allocation3] sm:$0xf] %v227
        %230 = vst [vmem:[#allocation3 + $0x8] sm:$0xf] %v228
        %v231 = vld [vmem:[#allocation2] sm:$0xff]
        %v232 = vld [vmem:[#allocation2 + $0x8] sm:$0xf]
        %v235 = vcombine.low %v231, %v231
        %v236 = vcombine.low %v232, %v232
        %237 = vrot.lane.b32.xlu0 %v235, 127
        %v238 = vpop.permute.xlu0 %237
        %239 = vrot.lane.b32.xlu0 %v231, 127
        %v240 = vpop.permute.xlu0 %239
        %241 = vrot.lane.b32.xlu0 %v236, 127
        %v242 = vpop.permute.xlu0 %241
        %vm243 = vcmask 1039360
        %v244 = vsel %vm243, %v238, %v240
        %v245 = vsel %vm243, %v240, %v242
        %248 = vst [vmem:[#allocation3] sm:$0xf0] %v244
        %249 = vst [vmem:[#allocation3 + $0x8] sm:$0xf0] %v245
        %v250 = vld [vmem:[#allocation2] sm:$0xff]
        %v251 = vld [vmem:[#allocation2 + $0x8] sm:$0xf]
        %vm252 = vcmp.lt.s32.totalorder %v219, 15
        %vm253 = vcmp.lt.s32.totalorder %v220, 15
        %v256 = vcombine.high %v250, %v250
        %257 = vrot.lane.b32.xlu0 %v250, 126
        %v258 = vpop.permute.xlu0 %257
        %259 = vrot.lane.b32.xlu0 %v256, 126
        %v260 = vpop.permute.xlu0 %259
        %261 = vrot.lane.b32.xlu0 %v251, 126
        %v262 = vpop.permute.xlu0 %261
        %vm263 = vcmask 1031168
        %v264 = vsel %vm263, %v258, %v260
        %v265 = vsel %vm263, %v260, %v262
        %v268 = vsel %vm252, %v264, 0.0
        %v269 = vsel %vm253, %v265, 0.0
        %270 = vst [vmem:[#allocation3 + $0x10] sm:$0xf] %v268
        %271 = vst [vmem:[#allocation3 + $0x18] sm:$0xf] %v269
        %v272 = vld [vmem:[#allocation2] sm:$0xff]
        %v273 = vld [vmem:[#allocation2 + $0x8] sm:$0xf]
        %v276 = vcombine.high %v272, %v272
        %277 = vrot.lane.b32.xlu0 %v272, 112
        %v278 = vpop.permute.xlu0 %277
        %279 = vrot.lane.b32.xlu0 %v276, 112
        %v280 = vpop.permute.xlu0 %279
        %281 = vrot.lane.b32.xlu0 %v273, 112
        %v282 = vpop.permute.xlu0 %281
        %vm283 = vcmask 916480
        %v284 = vsel %vm283, %v278, %v280
        %v285 = vsel %vm283, %v280, %v282
        %v288 = vsel %vm222, %v284, 0.0
        %v289 = vsel %vm223, %v285, 0.0
        %v292 = vrot.slane %v288, 4
        %v293 = vrot.slane %v289, 4
        %296 = vst [vmem:[#allocation3 + $0x10] sm:$0xf0] %v292
        %297 = vst [vmem:[#allocation3 + $0x18] sm:$0xf0] %v293
        %v298 = vld [vmem:[#allocation2] sm:$0xff]
        %v299 = vld [vmem:[#allocation2 + $0x8] sm:$0xf]
        %v302 = vcombine.high %v298, %v298
        %303 = vrot.lane.b32.xlu0 %v298, 111
        %v304 = vpop.permute.xlu0 %303
        %305 = vrot.lane.b32.xlu0 %v302, 111
        %v306 = vpop.permute.xlu0 %305
        %307 = vrot.lane.b32.xlu0 %v299, 111
        %v308 = vpop.permute.xlu0 %307
        %vm309 = vcmask 908288
        %v310 = vsel %vm309, %v304, %v306
        %v311 = vsel %vm309, %v306, %v308
        %314 = vst [vmem:[#allocation3 + $0x20] sm:$0xf] %v310
        %315 = vst [vmem:[#allocation3 + $0x28] sm:$0xf] %v311
        %v316 = vld [vmem:[#allocation2] sm:$0xff]
        %v317 = vld [vmem:[#allocation2 + $0x8] sm:$0xf]
        %v320 = vcombine.high %v316, %v316
        %321 = vrot.lane.b32.xlu0 %v316, 110
        %v322 = vpop.permute.xlu0 %321
        %323 = vrot.lane.b32.xlu0 %v320, 110
        %v324 = vpop.permute.xlu0 %323
        %325 = vrot.lane.b32.xlu0 %v317, 110
        %v326 = vpop.permute.xlu0 %325
        %vm327 = vcmask 900096
        %v328 = vsel %vm327, %v322, %v324
        %v329 = vsel %vm327, %v324, %v326
        %v332 = vsel %vm252, %v328, 0.0
        %v333 = vsel %vm253, %v329, 0.0
        %v336 = vrot.slane %v332, 4
        %v337 = vrot.slane %v333, 4
        %340 = vst [vmem:[#allocation3 + $0x20] sm:$0xf0] %v336
        %341 = vst [vmem:[#allocation3 + $0x28] sm:$0xf0] %v337
        %v342 = vld [vmem:[#allocation2] sm:$0xff]
        %v343 = vld [vmem:[#allocation2 + $0x8] sm:$0xf]
        %v346 = vcombine.high %v342, %v342
        %347 = vrot.lane.b32.xlu0 %v342, 96
        %v348 = vpop.permute.xlu0 %347
        %349 = vrot.lane.b32.xlu0 %v346, 96
        %v350 = vpop.permute.xlu0 %349
        %351 = vrot.lane.b32.xlu0 %v343, 96
        %v352 = vpop.permute.xlu0 %351
        %vm353 = vcmask 785408
        %v354 = vsel %vm353, %v348, %v350
        %v355 = vsel %vm353, %v350, %v352
        %v358 = vsel %vm222, %v354, 0.0
        %v359 = vsel %vm223, %v355, 0.0
        %360 = vst [vmem:[#allocation3 + $0x30] sm:$0xf] %v358
        %361 = vst [vmem:[#allocation3 + $0x38] sm:$0xf] %v359
        %v362 = vld [vmem:[#allocation2] sm:$0xff]
        %v363 = vld [vmem:[#allocation2 + $0x8] sm:$0xf]
        %v366 = vcombine.low %v362, %v362
        %v367 = vcombine.low %v363, %v363
        %368 = vrot.lane.b32.xlu0 %v366, 95
        %v369 = vpop.permute.xlu0 %368
        %370 = vrot.lane.b32.xlu0 %v362, 95
        %v371 = vpop.permute.xlu0 %370
        %372 = vrot.lane.b32.xlu0 %v367, 95
        %v373 = vpop.permute.xlu0 %372
        %vm374 = vcmask 777216
        %v375 = vsel %vm374, %v369, %v371
        %v376 = vsel %vm374, %v371, %v373
        %379 = vst [vmem:[#allocation3 + $0x30] sm:$0xf0] %v375
        %380 = vst [vmem:[#allocation3 + $0x38] sm:$0xf0] %v376
        %v381 = vld [vmem:[#allocation2] sm:$0xff]
        %v382 = vld [vmem:[#allocation2 + $0x8] sm:$0xf]
        %v385 = vcombine.high %v381, %v381
        %386 = vrot.lane.b32.xlu0 %v381, 94
        %v387 = vpop.permute.xlu0 %386
        %388 = vrot.lane.b32.xlu0 %v385, 94
        %v389 = vpop.permute.xlu0 %388
        %390 = vrot.lane.b32.xlu0 %v382, 94
        %v391 = vpop.permute.xlu0 %390
        %vm392 = vcmask 769024
        %v393 = vsel %vm392, %v387, %v389
        %v394 = vsel %vm392, %v389, %v391
        %v397 = vsel %vm252, %v393, 0.0
        %v398 = vsel %vm253, %v394, 0.0
        %399 = vst [vmem:[#allocation3 + $0x40] sm:$0xf] %v397
        %400 = vst [vmem:[#allocation3 + $0x48] sm:$0xf] %v398
        %v401 = vld [vmem:[#allocation6] sm:$0xff]
        %v402 = vpack.c.bf16 %v401, %v401
        %v403 = vld [vmem:[#allocation3] sm:$0xff]
        %v404 = vld [vmem:[#allocation3 + $0x8] sm:$0xff]
        %v405 = vld [vmem:[#allocation3 + $0x10] sm:$0xff]
        %v406 = vld [vmem:[#allocation3 + $0x18] sm:$0xff]
        %v407 = vld [vmem:[#allocation3 + $0x20] sm:$0xff]
        %v408 = vld [vmem:[#allocation3 + $0x28] sm:$0xff]
        %v409 = vld [vmem:[#allocation3 + $0x30] sm:$0xff]
        %v410 = vld [vmem:[#allocation3 + $0x38] sm:$0xff]
        %v411 = vld [vmem:[#allocation3 + $0x40] sm:$0xf]
        %v412 = vld [vmem:[#allocation3 + $0x48] sm:$0xf]
        %v413 = vpack.c.bf16 %v405, %v403
        %v414 = vpack.c.bf16 %v406, %v404
        %v415 = vpack.c.bf16 %v409, %v407
        %v416 = vpack.c.bf16 %v410, %v408
        %v417 = vpack.c.bf16 %v411, %v411
        %v418 = vpack.c.bf16 %v412, %v412
        %vm419 = vcmask 293888
        %v421 = vsel %vm419, %v402, 0
        %vm423 = vcmask 1041408
        %v425 = vsel %vm423, %v417, 0
        %v428 = vsel %vm423, %v418, 0
        %430 = vmatprep.subr.bf16.mxu0 %v414
        %431 = vmatpush1.bf16.msra.mxu0 %v413
        %432 = vmatprep.subr.bf16.mxu0 %v416
        %433 = vmatpush1.bf16.msra.mxu0 %v415
        %434 = vmatprep.subr.bf16.mxu0 %v428
        %435 = vmatpush1.bf16.msra.mxu0 %v425
        %436 = vmatprep.subr.bf16.mxu0 0
        %437 = vmatpush1.bf16.msra.mxu0 0
        %438 = vmatprep.subr.bf16.mxu0 0
        %439 = vmatpush1.bf16.msra.mxu0 0
        %440 = vmatprep.subr.bf16.mxu0 0
        %441 = vmatpush1.bf16.msra.mxu0 0
        %442 = vmatprep.subr.bf16.mxu0 0
        %443 = vmatpush1.bf16.msra.mxu0 0
        %444 = vmatprep.subr.bf16.mxu0 0
        %445 = vmatpush1.bf16.msra.mxu0 0
        %446 = vmatprep.subr.bf16.mxu0 0
        %447 = vmatpush1.bf16.msra.mxu0 0
        %448 = vmatprep.subr.bf16.mxu0 0
        %449 = vmatpush1.bf16.msra.mxu0 0
        %450 = vmatprep.subr.bf16.mxu0 0
        %451 = vmatpush1.bf16.msra.mxu0 0
        %452 = vmatprep.subr.bf16.mxu0 0
        %453 = vmatpush1.bf16.msra.mxu0 0
        %454 = vmatprep.subr.bf16.mxu0 0
        %455 = vmatpush1.bf16.msra.mxu0 0
        %456 = vmatprep.subr.bf16.mxu0 0
        %457 = vmatpush1.bf16.msra.mxu0 0
        %458 = vmatprep.subr.bf16.mxu0 0
        %459 = vmatpush1.bf16.msra.mxu0 0
        %460 = vmatprep.subr.bf16.mxu0 0
        %461 = vmatpush1.bf16.msra.mxu0 0
        %462 = vmatprep.mubr.bf16.mxu0 0
        %463 = vmatmul.mubr.bf16.gmra.mrb[0].mxu0 %v421
        %v464 = vpop.f32.mrb[0].mxu0
        %v465 = vadd.f32 0.0, %v464
        %v466 = vpop.f32.mrb[0].mxu0
        %v467 = vadd.f32 0.0, %v466
        %v468 = vpop.f32.mrb[0].mxu0
        %v469 = vpop.f32.mrb[0].mxu0
        %470 = vdwg.mxu0
        %v471 = vcombine.high %v176, %v176
        %473 = vst [vmem:[%s174] sm:$0xf] %v176
        %474 = vst [vmem:[%s174 + $0x8] sm:$0xf] %v471
        %v475 = vmax.f32 %v465, 0.0
        %v476 = vmax.f32 %v467, 0.0
        %v479 = vrot.slane %v475, 4
        %v480 = vrot.slane %v476, 4
        %483 = vst [vmem:[%s174] sm:$0xf0] %v479
        %484 = vst [vmem:[%s174 + $0x8] sm:$0xf0] %v480
        %485 = vst [vmem:[%s174 + $0x10] sm:$0xf] %v479
        %486 = vst [vmem:[%s174 + $0x18] sm:$0xf] %v480
        %p487 = scmp.lt.s32.totalorder %s17, 1
        %s488 = scalar_select %p487, %s17, 1
        %s489 = smul.addr %s488, 4
        %s490 = smul.addr %s489, 8
        %s491 = scalar_lea.vmem %s2, %s490
        // Predicated region
        $region37: #{tpu_custom_call.1} parent=27 // pred_check
          %p492 = pneg %p82
        $region38: #{tpu_custom_call.1} parent=27 // pred_check_branch
          %494 = sbr.rel (%p492) target = $region40
        $region39: #{tpu_custom_call.1} parent=27 // pred_region
          _
        $region40: #{tpu_custom_call.1} parent=27 // pred_fallthru
          _
      $region28: #{tpu_custom_call.1} parent=5 // pred_fallthru
        _
      %p495 = scmp.le.s32.totalorder 2, %s12
      // Predicated region
      $region41: #{tpu_custom_call.1} parent=5 // pred_check
        %p496 = pneg %p495
      $region42: #{tpu_custom_call.1} parent=5 // pred_check_branch
        %498 = sbr.rel (%p496) target = $region44
      $region43: #{tpu_custom_call.1} parent=5 // pred_region
        %s499 = ssub.s32 %s12, 2
        // Predicated region
        $region45: #{tpu_custom_call.1} parent=43 // pred_check
          %p500 = pneg %p88
        $region46: #{tpu_custom_call.1} parent=43 // pred_check_branch
          %502 = sbr.rel (%p500) target = $region48
        $region47: #{tpu_custom_call.1} parent=43 // pred_region
          %p503 = scmp.lt.s32.totalorder %s18, 1
          %s504 = scalar_select %p503, %s18, 1
          %s505 = smul.addr %s504, 4
          %s506 = smul.addr %s505, 8
          %s507 = scalar_lea.vmem %s2, %s506
        $region48: #{tpu_custom_call.1} parent=43 // pred_fallthru
          _
      $region44: #{tpu_custom_call.1} parent=5 // pred_fallthru
        _
    $region6: #{tpu_custom_call.1} parent=1 // loop_footer
      %s16 = sadd.s32 1, %s12
    $region7: #{tpu_custom_call.1} parent=1 // loop_footer_branch
      %11 = sbr.rel target = $region3
    $region8: #{tpu_custom_call.1} parent=1 // loop_exit
      _
    %508 = vsyncpa [#allocation5], 1
    %s509 = scalar_lea.sflag [#allocation5], 1
    %510 = vsyncpa %s509, 1
    %511 = vsyncpa [#allocation7], 1

</llo_original>
